<compile_context>
chip_gen: v6e
topology: v6e:2x2x1
jax: 0.10.0
libtpu: 0.0.40
codegen_flags: <defaults>
</compile_context>

<pallas_src>
import math

import jax
import jax.numpy as jnp
from jax import lax
from jax.experimental import pallas as pl
from jax.experimental.pallas import tpu as pltpu

# Model hyper-parameters (working_size=128, heads=4)
D = 128          # working_size
H = 4            # heads
HD = D // H      # head dim = 32
B = 2            # batch
L = 8            # sequence length
N = B * L        # total token rows per call (16)


def attention_block_kernel(x_ref, wqkv_ref, bqkv_ref, wout_ref, bout_ref,
                           smask_ref, bdmask_ref, o_ref):
    # x_ref:      (N, D)    f32
    # wqkv_ref:   (D, 3D)   bf16  composed [q|k|v] projection (q part pre-scaled by 1/sqrt(HD))
    # bqkv_ref:   (1, 3D)   f32
    # wout_ref:   (D, D)    bf16  composed out_proj @ self.out[0]
    # bout_ref:   (1, D)    f32
    # smask_ref:  (N, H*N)  f32   additive block-diagonal batch mask for the fused scores
    # bdmask_ref: (H*N, D)  bf16  0/1 head block-diagonal map (also the group-sum map)
    # o_ref:      (N, D)    f32
    x = x_ref[...].astype(jnp.bfloat16)

    # (1) Fused, pre-composed q/k/v projection: one (N,128)@(128,384) MXU matmul.
    qkv = jnp.dot(x, wqkv_ref[...], preferred_element_type=jnp.float32) + bqkv_ref[...]
    qkv = qkv.astype(jnp.bfloat16)                   # single cast; slices below are free
    q = qkv[:, 0 * D:1 * D]                          # (N, D), already scaled by 1/sqrt(HD)
    k = qkv[:, 1 * D:2 * D]
    v = qkv[:, 2 * D:3 * D]

    bd = bdmask_ref[...]                             # (H*N, D) 0/1 bf16
    # Head-stacked block-diagonal K / V: row block h keeps only head h's 32 lanes.
    k_bd = jnp.concatenate([k] * H, axis=0) * bd     # (H*N, D)
    v_bd = jnp.concatenate([v] * H, axis=0) * bd     # (H*N, D)

    # (2) All heads' and both batches' scores in ONE matmul: (N,D)·(H*N,D)^T -> (N, H*N).
    s = lax.dot_general(q, k_bd, (((1,), (1,)), ((), ())),
                        preferred_element_type=jnp.float32)
    s = s + smask_ref[...]                           # cross-batch entries -> -1e30
    s = s - jnp.max(s, axis=-1, keepdims=True)       # shared row shift (softmax-invariant per group)
    p = jnp.exp(s).astype(jnp.bfloat16)              # (N, H*N)

    # (3) One matmul yields both the unnormalized multi-head context (lanes 0:D) and the
    #     per-head softmax denominators broadcast onto each head's 32 lanes (lanes D:2D).
    vg = jnp.concatenate([v_bd, bd], axis=-1)        # (H*N, 2D)
    pv = jnp.dot(p, vg, preferred_element_type=jnp.float32)      # (N, 2D)
    ctx = pv[:, :D] * pl.reciprocal(pv[:, D:], approx=True)      # normalized context, f32

    # (4) Composed output projection (out_proj ∘ self.out[0]): single K=128 matmul.
    out = jnp.dot(ctx.astype(jnp.bfloat16), wout_ref[...],
                  preferred_element_type=jnp.float32) + bout_ref[...]
    o_ref[...] = out.astype(o_ref.dtype)


# Raw (un-composed) parameter names, matching the PyTorch module's Linears.
PARAM_NAMES = [
    "wq", "bq", "wk", "bk", "wv", "bv",
    "iwq", "ibq", "iwk", "ibk", "iwv", "ibv",
    "wo", "bo",
    "wf", "bf",
]


def make_params(key):
    """Deterministic init. Weights stored pre-transposed: y = x @ W + b."""
    keys = jax.random.split(key, 2 * len(PARAM_NAMES))
    std = math.sqrt(2.0 / (D + D))
    params = {}
    for i, name in enumerate(PARAM_NAMES):
        if name.startswith("b") or name.startswith("ib"):
            params[name] = 0.01 * jax.random.normal(keys[i], (1, D), jnp.float32)
        else:
            params[name] = std * jax.random.normal(keys[i], (D, D), jnp.float32)
    return params


def compose_params(p):
    """Fold (self.q ∘ in_proj_q) etc. and (out_proj ∘ self.out[0]) into 4 tensors.

    The q branch (weight + bias) is additionally pre-scaled by 1/sqrt(head_dim) so the
    kernel needs no per-score scale. Weights -> bf16 (halves HBM bytes); biases stay f32.
    """
    scale = 1.0 / math.sqrt(HD)
    wq = (p["wq"] @ p["iwq"]) * scale
    bq = (p["bq"] @ p["iwq"] + p["ibq"]) * scale
    wk = p["wk"] @ p["iwk"]
    bk = p["bk"] @ p["iwk"] + p["ibk"]
    wv = p["wv"] @ p["iwv"]
    bv = p["bv"] @ p["iwv"] + p["ibv"]
    wqkv = jnp.concatenate([wq, wk, wv], axis=1).astype(jnp.bfloat16)   # (D, 3D)
    bqkv = jnp.concatenate([bq, bk, bv], axis=1).astype(jnp.float32)    # (1, 3D)
    wout = (p["wo"] @ p["wf"]).astype(jnp.bfloat16)                     # (D, D)
    bout = (p["bo"] @ p["wf"] + p["bf"]).astype(jnp.float32)            # (1, D)
    return wqkv, bqkv, wout, bout


def make_masks():
    """Compile-time constant masks for the fused batch/head attention."""
    # Additive batch-separation mask on the (N, H*N) scores: query row i (batch i//L)
    # may only attend to key column j whose token (j % N) lies in the same batch.
    qb = jnp.arange(N)[:, None] // L
    kb = (jnp.arange(H * N)[None, :] % N) // L
    smask = jnp.where(qb == kb, 0.0, -1e30).astype(jnp.float32)         # (N, H*N)
    # 0/1 head block-diagonal map: row j of K_bd/V_bd belongs to head j//N, column d to
    # head d//HD.  Doubles as the group-sum map for the softmax denominators.
    rh = jnp.arange(H * N)[:, None] // N
    ch = jnp.arange(D)[None, :] // HD
    bdmask = (rh == ch).astype(jnp.bfloat16)                            # (H*N, D)
    return smask, bdmask


def attention_block(x, fused, masks):
    """x: (B, L, D) f32; fused: (wqkv, bqkv, wout, bout); masks: (smask, bdmask)."""
    Bx, Lx, Dx = x.shape
    wqkv, bqkv, wout, bout = fused
    smask, bdmask = masks
    x2d = x.reshape(Bx * Lx, Dx)

    out2d = pl.pallas_call(
        attention_block_kernel,
        out_shape=jax.ShapeDtypeStruct((Bx * Lx, Dx), jnp.float32),
        grid=(1,),  # single step: weights/biases/masks DMA'd exactly once, no per-batch grid overhead
        in_specs=[
            pl.BlockSpec((Bx * Lx, Dx), lambda i: (0, 0)),   # x slab
            pl.BlockSpec(wqkv.shape, lambda i: (0, 0)),      # fused q/k/v weight
            pl.BlockSpec(bqkv.shape, lambda i: (0, 0)),      # fused q/k/v bias
            pl.BlockSpec(wout.shape, lambda i: (0, 0)),      # composed output weight
            pl.BlockSpec(bout.shape, lambda i: (0, 0)),      # composed output bias
            pl.BlockSpec(smask.shape, lambda i: (0, 0)),     # batch block mask (scores)
            pl.BlockSpec(bdmask.shape, lambda i: (0, 0)),    # head block-diag / group map
        ],
        out_specs=pl.BlockSpec((Bx * Lx, Dx), lambda i: (0, 0)),
        compiler_params=pltpu.CompilerParams(
            dimension_semantics=("arbitrary",)),             # tiny latency-bound kernel: one TC
    )(x2d, wqkv, bqkv, wout, bout, smask, bdmask)
    return out2d.reshape(Bx, Lx, Dx)


def reference(x, p):
    """Pure-JAX f32 reference of the PyTorch forward (eval mode, dropout=0, attn_mask=None)."""
    q = x @ p["wq"] + p["bq"]
    k = x @ p["wk"] + p["bk"]
    v = x @ p["wv"] + p["bv"]
    q = q @ p["iwq"] + p["ibq"]
    k = k @ p["iwk"] + p["ibk"]
    v = v @ p["iwv"] + p["ibv"]
    Bx, Lx, _ = x.shape
    qh = q.reshape(Bx, Lx, H, HD).transpose(0, 2, 1, 3)
    kh = k.reshape(Bx, Lx, H, HD).transpose(0, 2, 1, 3)
    vh = v.reshape(Bx, Lx, H, HD).transpose(0, 2, 1, 3)
    s = jnp.einsum("bhqd,bhkd->bhqk", qh, kh) / math.sqrt(HD)
    a = jax.nn.softmax(s, axis=-1)
    ctx = jnp.einsum("bhqk,bhkd->bhqd", a, vh).transpose(0, 2, 1, 3).reshape(Bx, Lx, D)
    attn = ctx @ p["wo"] + p["bo"]
    return attn @ p["wf"] + p["bf"]


if __name__ == "__main__":
    key = jax.random.PRNGKey(0)
    k_x, k_p = jax.random.split(key)

    x = jax.random.normal(k_x, (B, L, D), jnp.float32)
    params = make_params(k_p)
    fused = compose_params(params)
    masks = make_masks()

    out = attention_block(x, fused, masks)
    jax.block_until_ready(out)

    ref = reference(x, params)
    assert out.shape == (B, L, D)
    # Weight composition / block-diagonal batching are exact algebra; remaining delta is
    # bf16 operand rounding (x, weights, P, denominators) + approx reciprocal.
    max_err = jnp.max(jnp.abs(out - ref))
    assert jnp.allclose(out, ref, atol=4e-2, rtol=4e-2), f"max abs err = {max_err}"
    print("KERNEL_OK")
</pallas_src>

<mosaic_0001>
module attributes {stable_mosaic.version = 11 : i64} {
  func.func @attention_block_kernel(%arg0: i32, %arg1: memref<16x128xf32, #tpu.memory_space<vmem>>, %arg2: memref<128x384xbf16, #tpu.memory_space<vmem>>, %arg3: memref<1x384xf32, #tpu.memory_space<vmem>>, %arg4: memref<128x128xbf16, #tpu.memory_space<vmem>>, %arg5: memref<1x128xf32, #tpu.memory_space<vmem>>, %arg6: memref<16x64xf32, #tpu.memory_space<vmem>>, %arg7: memref<64x128xbf16, #tpu.memory_space<vmem>>, %arg8: memref<16x128xf32, #tpu.memory_space<vmem>>) attributes {dimension_semantics = [#tpu.dimension_semantics<arbitrary>], iteration_bounds = array<i64: 1>, scalar_prefetch = 0 : i64, scratch_operands = 0 : i64, tpu.core_type = #tpu.core_type<tc>, window_params = [{pipeline_mode = #tpu.pipeline_mode<synchronous>, transform_indices = @transform_0, window_bounds = array<i64: 16, 128>}, {pipeline_mode = #tpu.pipeline_mode<synchronous>, transform_indices = @transform_1, window_bounds = array<i64: 128, 384>}, {pipeline_mode = #tpu.pipeline_mode<synchronous>, transform_indices = @transform_2, window_bounds = array<i64: 1, 384>}, {pipeline_mode = #tpu.pipeline_mode<synchronous>, transform_indices = @transform_3, window_bounds = array<i64: 128, 128>}, {pipeline_mode = #tpu.pipeline_mode<synchronous>, transform_indices = @transform_4, window_bounds = array<i64: 1, 128>}, {pipeline_mode = #tpu.pipeline_mode<synchronous>, transform_indices = @transform_5, window_bounds = array<i64: 16, 64>}, {pipeline_mode = #tpu.pipeline_mode<synchronous>, transform_indices = @transform_6, window_bounds = array<i64: 64, 128>}, {pipeline_mode = #tpu.pipeline_mode<synchronous>, transform_indices = @transform_7, window_bounds = array<i64: 16, 128>}]} {
    %c0 = arith.constant 0 : index
    %c0_0 = arith.constant 0 : index
    %0 = vector.load %arg1[%c0, %c0_0] : memref<16x128xf32, #tpu.memory_space<vmem>>, vector<16x128xf32>
    %1 = arith.truncf %0 : vector<16x128xf32> to vector<16x128xbf16>
    %c0_1 = arith.constant 0 : index
    %c0_2 = arith.constant 0 : index
    %2 = vector.load %arg2[%c0_1, %c0_2] : memref<128x384xbf16, #tpu.memory_space<vmem>>, vector<128x384xbf16>
    %cst = arith.constant dense<0.000000e+00> : vector<16x384xf32>
    %3 = tpu.matmul %1, %2, %cst {dimension_numbers = #tpu.dot_dimension_numbers<[1], [0], [0], [1], [0, 0, 1, 1], [], []>} : vector<16x128xbf16>, vector<128x384xbf16>, vector<16x384xf32> -> vector<16x384xf32>
    %c0_3 = arith.constant 0 : index
    %c0_4 = arith.constant 0 : index
    %4 = vector.load %arg3[%c0_3, %c0_4] : memref<1x384xf32, #tpu.memory_space<vmem>>, vector<1x384xf32>
    %5 = vector.broadcast %4 : vector<1x384xf32> to vector<16x384xf32>
    %6 = arith.addf %3, %5 : vector<16x384xf32>
    %7 = arith.truncf %6 : vector<16x384xf32> to vector<16x384xbf16>
    %8 = vector.extract_strided_slice %7 {offsets = [0, 0], sizes = [16, 128], strides = [1, 1]} : vector<16x384xbf16> to vector<16x128xbf16>
    %9 = vector.extract_strided_slice %7 {offsets = [0, 128], sizes = [16, 128], strides = [1, 1]} : vector<16x384xbf16> to vector<16x128xbf16>
    %10 = vector.extract_strided_slice %7 {offsets = [0, 256], sizes = [16, 128], strides = [1, 1]} : vector<16x384xbf16> to vector<16x128xbf16>
    %c0_5 = arith.constant 0 : index
    %c0_6 = arith.constant 0 : index
    %11 = vector.load %arg7[%c0_5, %c0_6] : memref<64x128xbf16, #tpu.memory_space<vmem>>, vector<64x128xbf16>
    %12 = tpu.concatenate %9, %9, %9, %9 in 0 : vector<16x128xbf16>, vector<16x128xbf16>, vector<16x128xbf16>, vector<16x128xbf16> -> vector<64x128xbf16>
    %13 = arith.mulf %12, %11 : vector<64x128xbf16>
    %14 = tpu.concatenate %10, %10, %10, %10 in 0 : vector<16x128xbf16>, vector<16x128xbf16>, vector<16x128xbf16>, vector<16x128xbf16> -> vector<64x128xbf16>
    %15 = arith.mulf %14, %11 : vector<64x128xbf16>
    %cst_7 = arith.constant dense<0.000000e+00> : vector<16x64xf32>
    %16 = tpu.matmul %8, %13, %cst_7 {dimension_numbers = #tpu.dot_dimension_numbers<[1], [1], [0], [0], [0, 0, 1, 0], [], []>} : vector<16x128xbf16>, vector<64x128xbf16>, vector<16x64xf32> -> vector<16x64xf32>
    %c0_8 = arith.constant 0 : index
    %c0_9 = arith.constant 0 : index
    %17 = vector.load %arg6[%c0_8, %c0_9] : memref<16x64xf32, #tpu.memory_space<vmem>>, vector<16x64xf32>
    %18 = arith.addf %16, %17 : vector<16x64xf32>
    %cst_10 = arith.constant dense<0xFF800000> : vector<16xf32>
    %19 = vector.multi_reduction <maximumf>, %18, %cst_10 [1] : vector<16x64xf32> to vector<16xf32>
    %20 = vector.shape_cast %19 : vector<16xf32> to vector<16x1xf32>
    %21 = vector.broadcast %20 : vector<16x1xf32> to vector<16x64xf32>
    %22 = arith.subf %18, %21 : vector<16x64xf32>
    %23 = math.exp %22 : vector<16x64xf32>
    %24 = arith.truncf %23 : vector<16x64xf32> to vector<16x64xbf16>
    %25 = tpu.concatenate %15, %11 in 1 : vector<64x128xbf16>, vector<64x128xbf16> -> vector<64x256xbf16>
    %cst_11 = arith.constant dense<0.000000e+00> : vector<16x256xf32>
    %26 = tpu.matmul %24, %25, %cst_11 {dimension_numbers = #tpu.dot_dimension_numbers<[1], [0], [0], [1], [0, 0, 1, 1], [], []>} : vector<16x64xbf16>, vector<64x256xbf16>, vector<16x256xf32> -> vector<16x256xf32>
    %27 = vector.extract_strided_slice %26 {offsets = [0, 0], sizes = [16, 128], strides = [1, 1]} : vector<16x256xf32> to vector<16x128xf32>
    %28 = vector.extract_strided_slice %26 {offsets = [0, 128], sizes = [16, 128], strides = [1, 1]} : vector<16x256xf32> to vector<16x128xf32>
    %29 = tpu.reciprocal %28 {approx = true} : vector<16x128xf32> -> vector<16x128xf32>
    %30 = arith.mulf %27, %29 : vector<16x128xf32>
    %31 = arith.truncf %30 : vector<16x128xf32> to vector<16x128xbf16>
    %c0_12 = arith.constant 0 : index
    %c0_13 = arith.constant 0 : index
    %32 = vector.load %arg4[%c0_12, %c0_13] : memref<128x128xbf16, #tpu.memory_space<vmem>>, vector<128x128xbf16>
    %cst_14 = arith.constant dense<0.000000e+00> : vector<16x128xf32>
    %33 = tpu.matmul %31, %32, %cst_14 {dimension_numbers = #tpu.dot_dimension_numbers<[1], [0], [0], [1], [0, 0, 1, 1], [], []>} : vector<16x128xbf16>, vector<128x128xbf16>, vector<16x128xf32> -> vector<16x128xf32>
    %c0_15 = arith.constant 0 : index
    %c0_16 = arith.constant 0 : index
    %34 = vector.load %arg5[%c0_15, %c0_16] : memref<1x128xf32, #tpu.memory_space<vmem>>, vector<1x128xf32>
    %35 = vector.broadcast %34 : vector<1x128xf32> to vector<16x128xf32>
    %36 = arith.addf %33, %35 : vector<16x128xf32>
    %c0_17 = arith.constant 0 : index
    %c0_18 = arith.constant 0 : index
    %37 = vector.load %arg8[%c0_17, %c0_18] : memref<16x128xf32, #tpu.memory_space<vmem>>, vector<16x128xf32>
    tpu.vector_store %arg8[%c0_17, %c0_18], %36 {strides = array<i32>} : memref<16x128xf32, #tpu.memory_space<vmem>>, vector<16x128xf32>,
    return
  }
  func.func @transform_0(%arg0: i32) -> (i32, i32) {
    %c0_i32 = arith.constant 0 : i32
    %c0_i32_0 = arith.constant 0 : i32
    %c0_i32_1 = arith.constant 0 : i32
    return %c0_i32, %c0_i32_0 : i32, i32
  }
  func.func @transform_1(%arg0: i32) -> (i32, i32) {
    %c0_i32 = arith.constant 0 : i32
    %c0_i32_0 = arith.constant 0 : i32
    %c0_i32_1 = arith.constant 0 : i32
    return %c0_i32, %c0_i32_0 : i32, i32
  }
  func.func @transform_2(%arg0: i32) -> (i32, i32) {
    %c0_i32 = arith.constant 0 : i32
    %c0_i32_0 = arith.constant 0 : i32
    %c0_i32_1 = arith.constant 0 : i32
    return %c0_i32, %c0_i32_0 : i32, i32
  }
  func.func @transform_3(%arg0: i32) -> (i32, i32) {
    %c0_i32 = arith.constant 0 : i32
    %c0_i32_0 = arith.constant 0 : i32
    %c0_i32_1 = arith.constant 0 : i32
    return %c0_i32, %c0_i32_0 : i32, i32
  }
  func.func @transform_4(%arg0: i32) -> (i32, i32) {
    %c0_i32 = arith.constant 0 : i32
    %c0_i32_0 = arith.constant 0 : i32
    %c0_i32_1 = arith.constant 0 : i32
    return %c0_i32, %c0_i32_0 : i32, i32
  }
  func.func @transform_5(%arg0: i32) -> (i32, i32) {
    %c0_i32 = arith.constant 0 : i32
    %c0_i32_0 = arith.constant 0 : i32
    %c0_i32_1 = arith.constant 0 : i32
    return %c0_i32, %c0_i32_0 : i32, i32
  }
  func.func @transform_6(%arg0: i32) -> (i32, i32) {
    %c0_i32 = arith.constant 0 : i32
    %c0_i32_0 = arith.constant 0 : i32
    %c0_i32_1 = arith.constant 0 : i32
    return %c0_i32, %c0_i32_0 : i32, i32
  }
  func.func @transform_7(%arg0: i32) -> (i32, i32) {
    %c0_i32 = arith.constant 0 : i32
    %c0_i32_0 = arith.constant 0 : i32
    %c0_i32_1 = arith.constant 0 : i32
    return %c0_i32, %c0_i32_0 : i32, i32
  }
}

</mosaic_0001>

<llo_original>
// kernel: tpu_custom_call.1
$region0: #{tpu_custom_call.1}
  #allocation0 [shape = 'u32[]', space=smem, size = 0x4, offset = 0x4, fixed_abs, tag = 'smem constant byte address 0x4 - core index']
  #allocation1 [shape = 'u32[144,128]{1,0:T(1,128)}', space=vmem, size = 0x12000, scoped, tag = 'internal scratch']
  %s0 = inlined_call_operand.hbm [shape: f32[16,128], index: 0, kind: input, shape index: {}]
  %s1 = inlined_call_operand.hbm [shape: bf16[128,384], index: 1, kind: input, shape index: {}]
  %s2 = inlined_call_operand.vmem [shape: f32[1,384], index: 2, kind: input, shape index: {}]
  %s3 = inlined_call_operand.hbm [shape: bf16[128,128], index: 3, kind: input, shape index: {}]
  %s4 = inlined_call_operand.vmem [shape: f32[1,128], index: 4, kind: input, shape index: {}]
  %s5 = inlined_call_operand.hbm [shape: f32[16,64], index: 5, kind: input, shape index: {}]
  %s6 = inlined_call_operand.hbm [shape: bf16[64,128], index: 6, kind: input, shape index: {}]
  %s7 = inlined_call_operand.hbm [shape: f32[16,128], index: 7, kind: output, shape index: {}]
  %s8 = sld [smem:[#allocation0]]
  $region58: #{tpu_custom_call.1} parent=0
    _
  %s10 = ssub.s32 1, %s8
  %s11 = scalar_select 0, %s10, %s8
  $region1: #{tpu_custom_call.1} parent=0
    #allocation2 [shape = 'u8[8192]{0}', space=vmem, size = 0x2000, scoped, tag = 'input window, operand 0, single buffered']
    #allocation3 [shape = 's32[1]{0}', space=sflag, size = 0x4, scoped, tag = 'scoped memory for tpu_custom_call.1']
    #allocation4 [shape = 's32[1]{0}', space=sflag, size = 0x4, scoped, tag = 'scoped memory for tpu_custom_call.1']
    #allocation5 [shape = 'u8[98304]{0}', space=vmem, size = 0x18000, scoped, tag = 'input window, operand 1, single buffered']
    #allocation6 [shape = 's32[1]{0}', space=sflag, size = 0x4, scoped, tag = 'scoped memory for tpu_custom_call.1']
    #allocation7 [shape = 'u8[32768]{0}', space=vmem, size = 0x8000, scoped, tag = 'input window, operand 3, single buffered']
    #allocation8 [shape = 'u8[8192]{0}', space=vmem, size = 0x2000, scoped, tag = 'input window, operand 5, single buffered']
    #allocation9 [shape = 's32[1]{0}', space=sflag, size = 0x4, scoped, tag = 'scoped memory for tpu_custom_call.1']
    #allocation10 [shape = 'u8[16384]{0}', space=vmem, size = 0x4000, scoped, tag = 'input window, operand 6, single buffered']
    #allocation11 [shape = 'u8[8192]{0}', space=vmem, size = 0x2000, scoped, tag = 'output window, operand 0, single buffered']
    %12 = vsyncpa [#allocation3], 0
    %13 = vsyncpa [#allocation6], 0
    %14 = vsyncpa [#allocation9], 0
    %15 = vsyncpa [#allocation4], 0
    // Predicated region
    $region2: #{tpu_custom_call.1} parent=1 // pred_check
      _
    $region3: #{tpu_custom_call.1} parent=1 // pred_check_branch
      %17 = sbr.rel (0) target = $region5
    $region4: #{tpu_custom_call.1} parent=1 // pred_region
      %s19 = ssub.s32 256, 256
      %20 = vsyncadd [#allocation3], %s19
      %s21 = sshll.u32 [#allocation2], 4
      %s22 = int_to_ptr.vmem [resolvable:$true] %s21
      %27 = dma.hbm_to_vmem [thread:$0]  %s0, 256, %s22, [#allocation3], 128, 128, 8
    $region5: #{tpu_custom_call.1} parent=1 // pred_fallthru
      _
    // Predicated region
    $region6: #{tpu_custom_call.1} parent=1 // pred_check
      _
    $region7: #{tpu_custom_call.1} parent=1 // pred_check_branch
      %29 = sbr.rel (0) target = $region9
    $region8: #{tpu_custom_call.1} parent=1 // pred_region
      %s31 = ssub.s32 3072, 3072
      %32 = vsyncadd [#allocation6], %s31
      %s33 = sshll.u32 [#allocation5], 4
      %s34 = int_to_ptr.vmem [resolvable:$true] %s33
      %39 = dma.hbm_to_vmem [thread:$0]  %s1, 3072, %s34, [#allocation6], 192, 192, 12
    $region9: #{tpu_custom_call.1} parent=1 // pred_fallthru
      _
    // Predicated region
    $region10: #{tpu_custom_call.1} parent=1 // pred_check
      _
    $region11: #{tpu_custom_call.1} parent=1 // pred_check_branch
      %41 = sbr.rel (0) target = $region13
    $region12: #{tpu_custom_call.1} parent=1 // pred_region
      _
    $region13: #{tpu_custom_call.1} parent=1 // pred_fallthru
      _
    // Predicated region
    $region14: #{tpu_custom_call.1} parent=1 // pred_check
      _
    $region15: #{tpu_custom_call.1} parent=1 // pred_check_branch
      %43 = sbr.rel (0) target = $region17
    $region16: #{tpu_custom_call.1} parent=1 // pred_region
      %s45 = ssub.s32 1024, 1024
      %46 = vsyncadd [#allocation6], %s45
      %s47 = sshll.u32 [#allocation7], 4
      %s48 = int_to_ptr.vmem [resolvable:$true] %s47
      %53 = dma.hbm_to_vmem [thread:$0]  %s3, 1024, %s48, [#allocation6], 64, 64, 4
    $region17: #{tpu_custom_call.1} parent=1 // pred_fallthru
      _
    // Predicated region
    $region18: #{tpu_custom_call.1} parent=1 // pred_check
      _
    $region19: #{tpu_custom_call.1} parent=1 // pred_check_branch
      %55 = sbr.rel (0) target = $region21
    $region20: #{tpu_custom_call.1} parent=1 // pred_region
      _
    $region21: #{tpu_custom_call.1} parent=1 // pred_fallthru
      _
    // Predicated region
    $region22: #{tpu_custom_call.1} parent=1 // pred_check
      _
    $region23: #{tpu_custom_call.1} parent=1 // pred_check_branch
      %57 = sbr.rel (0) target = $region25
    $region24: #{tpu_custom_call.1} parent=1 // pred_region
      %s59 = ssub.s32 256, 256
      %60 = vsyncadd [#allocation9], %s59
      %s61 = sshll.u32 [#allocation8], 4
      %s62 = int_to_ptr.vmem [resolvable:$true] %s61
      %67 = dma.hbm_to_vmem [thread:$0]  %s5, 256, %s62, [#allocation9], 128, 128, 8
    $region25: #{tpu_custom_call.1} parent=1 // pred_fallthru
      _
    // Predicated region
    $region26: #{tpu_custom_call.1} parent=1 // pred_check
      _
    $region27: #{tpu_custom_call.1} parent=1 // pred_check_branch
      %69 = sbr.rel (0) target = $region29
    $region28: #{tpu_custom_call.1} parent=1 // pred_region
      %s71 = ssub.s32 512, 512
      %72 = vsyncadd [#allocation9], %s71
      %s73 = sshll.u32 [#allocation10], 4
      %s74 = int_to_ptr.vmem [resolvable:$true] %s73
      %79 = dma.hbm_to_vmem [thread:$0]  %s6, 512, %s74, [#allocation9], 64, 64, 4
    $region29: #{tpu_custom_call.1} parent=1 // pred_fallthru
      _
    // Predicated region
    $region30: #{tpu_custom_call.1} parent=1 // pred_check
      _
    $region31: #{tpu_custom_call.1} parent=1 // pred_check_branch
      %81 = sbr.rel (0) target = $region33
    $region32: #{tpu_custom_call.1} parent=1 // pred_region
      %82 = dma.done [#allocation3], 256
    $region33: #{tpu_custom_call.1} parent=1 // pred_fallthru
      _
    // Predicated region
    $region34: #{tpu_custom_call.1} parent=1 // pred_check
      _
    $region35: #{tpu_custom_call.1} parent=1 // pred_check_branch
      %84 = sbr.rel (0) target = $region37
    $region36: #{tpu_custom_call.1} parent=1 // pred_region
      %85 = dma.done [#allocation6], 3072
    $region37: #{tpu_custom_call.1} parent=1 // pred_fallthru
      _
    // Predicated region
    $region38: #{tpu_custom_call.1} parent=1 // pred_check
      _
    $region39: #{tpu_custom_call.1} parent=1 // pred_check_branch
      %87 = sbr.rel (0) target = $region41
    $region40: #{tpu_custom_call.1} parent=1 // pred_region
      %88 = dma.done [#allocation6], 1024
    $region41: #{tpu_custom_call.1} parent=1 // pred_fallthru
      _
    // Predicated region
    $region42: #{tpu_custom_call.1} parent=1 // pred_check
      _
    $region43: #{tpu_custom_call.1} parent=1 // pred_check_branch
      %90 = sbr.rel (0) target = $region45
    $region44: #{tpu_custom_call.1} parent=1 // pred_region
      %91 = dma.done [#allocation9], 256
    $region45: #{tpu_custom_call.1} parent=1 // pred_fallthru
      _
    // Predicated region
    $region46: #{tpu_custom_call.1} parent=1 // pred_check
      _
    $region47: #{tpu_custom_call.1} parent=1 // pred_check_branch
      %93 = sbr.rel (0) target = $region49
    $region48: #{tpu_custom_call.1} parent=1 // pred_region
      %94 = dma.done [#allocation9], 512
    $region49: #{tpu_custom_call.1} parent=1 // pred_fallthru
      _
    %v96 = vld [vmem:[#allocation2] sm:$0xff]
    %v97 = vld [vmem:[#allocation2 + $0x8] sm:$0xff]
    %v98 = vpack.c.bf16 %v97, %v96
    %v99 = vld [vmem:[#allocation5] sm:$0xff]
    %v100 = vld [vmem:[#allocation5 + $0x8] sm:$0xf]
    %v101 = vld [vmem:[#allocation5 + $0xc] sm:$0xff]
    %v102 = vld [vmem:[#allocation5 + $0x14] sm:$0xf]
    %v103 = vld [vmem:[#allocation5 + $0x18] sm:$0xff]
    %v104 = vld [vmem:[#allocation5 + $0x20] sm:$0xf]
    %v105 = vld [vmem:[#allocation5 + $0x24] sm:$0xff]
    %v106 = vld [vmem:[#allocation5 + $0x2c] sm:$0xf]
    %v107 = vld [vmem:[#allocation5 + $0x30] sm:$0xff]
    %v108 = vld [vmem:[#allocation5 + $0x38] sm:$0xf]
    %v109 = vld [vmem:[#allocation5 + $0x3c] sm:$0xff]
    %v110 = vld [vmem:[#allocation5 + $0x44] sm:$0xf]
    %v111 = vld [vmem:[#allocation5 + $0x48] sm:$0xff]
    %v112 = vld [vmem:[#allocation5 + $0x50] sm:$0xf]
    %v113 = vld [vmem:[#allocation5 + $0x54] sm:$0xff]
    %v114 = vld [vmem:[#allocation5 + $0x5c] sm:$0xf]
    %v115 = vld [vmem:[#allocation5 + $0x60] sm:$0xff]
    %v116 = vld [vmem:[#allocation5 + $0x68] sm:$0xf]
    %v117 = vld [vmem:[#allocation5 + $0x6c] sm:$0xff]
    %v118 = vld [vmem:[#allocation5 + $0x74] sm:$0xf]
    %v119 = vld [vmem:[#allocation5 + $0x78] sm:$0xff]
    %v120 = vld [vmem:[#allocation5 + $0x80] sm:$0xf]
    %v121 = vld [vmem:[#allocation5 + $0x84] sm:$0xff]
    %v122 = vld [vmem:[#allocation5 + $0x8c] sm:$0xf]
    %v123 = vld [vmem:[#allocation5 + $0x90] sm:$0xff]
    %v124 = vld [vmem:[#allocation5 + $0x98] sm:$0xf]
    %v125 = vld [vmem:[#allocation5 + $0x9c] sm:$0xff]
    %v126 = vld [vmem:[#allocation5 + $0xa4] sm:$0xf]
    %v127 = vld [vmem:[#allocation5 + $0xa8] sm:$0xff]
    %v128 = vld [vmem:[#allocation5 + $0xb0] sm:$0xf]
    %v129 = vld [vmem:[#allocation5 + $0xb4] sm:$0xff]
    %v130 = vld [vmem:[#allocation5 + $0xbc] sm:$0xf]
    %v131 = vld [vmem:[%s2] sm:$0x7]
    %v133 = vlaneseq
    %v134 = vshrl.u32 %v133, 7
    %v135 = vsub.s32 0, %v134
    %v136 = vrot.slane %v131, %v135
    %v137 = vlaneseq
    %v138 = vshrl.u32 %v137, 7
    %v139 = vsub.s32 1, %v138
    %v140 = vrot.slane %v131, %v139
    %v141 = vlaneseq
    %v142 = vshrl.u32 %v141, 7
    %v143 = vsub.s32 2, %v142
    %v144 = vrot.slane %v131, %v143
    %v180 = vunpack.c.l.b16 %v99
    %v181 = vunpack.c.h.b16 %v99
    %v182 = vunpack.c.l.b16 %v100
    %v183 = vunpack.c.l.b16 %v101
    %v184 = vunpack.c.h.b16 %v101
    %v185 = vunpack.c.l.b16 %v102
    %v186 = vunpack.c.l.b16 %v103
    %v187 = vunpack.c.h.b16 %v103
    %v188 = vunpack.c.l.b16 %v104
    %v189 = vunpack.c.l.b16 %v105
    %v190 = vunpack.c.h.b16 %v105
    %v191 = vunpack.c.l.b16 %v106
    %v192 = vunpack.c.l.b16 %v107
    %v193 = vunpack.c.h.b16 %v107
    %v194 = vunpack.c.l.b16 %v108
    %v195 = vunpack.c.l.b16 %v109
    %v196 = vunpack.c.h.b16 %v109
    %v197 = vunpack.c.l.b16 %v110
    %v198 = vunpack.c.l.b16 %v111
    %v199 = vunpack.c.h.b16 %v111
    %v200 = vunpack.c.l.b16 %v112
    %v201 = vunpack.c.l.b16 %v113
    %v202 = vunpack.c.h.b16 %v113
    %v203 = vunpack.c.l.b16 %v114
    %v204 = vunpack.c.l.b16 %v115
    %v205 = vunpack.c.h.b16 %v115
    %v206 = vunpack.c.l.b16 %v116
    %v207 = vunpack.c.l.b16 %v117
    %v208 = vunpack.c.h.b16 %v117
    %v209 = vunpack.c.l.b16 %v118
    %v210 = vunpack.c.l.b16 %v119
    %v211 = vunpack.c.h.b16 %v119
    %v212 = vunpack.c.l.b16 %v120
    %v213 = vunpack.c.l.b16 %v121
    %v214 = vunpack.c.h.b16 %v121
    %v215 = vunpack.c.l.b16 %v122
    %v216 = vunpack.c.l.b16 %v123
    %v217 = vunpack.c.h.b16 %v123
    %v218 = vunpack.c.l.b16 %v124
    %v219 = vunpack.c.l.b16 %v125
    %v220 = vunpack.c.h.b16 %v125
    %v221 = vunpack.c.l.b16 %v126
    %v222 = vunpack.c.l.b16 %v127
    %v223 = vunpack.c.h.b16 %v127
    %v224 = vunpack.c.l.b16 %v128
    %v225 = vunpack.c.l.b16 %v129
    %v226 = vunpack.c.h.b16 %v129
    %v227 = vunpack.c.l.b16 %v130
    %v228 = vpack.c.b16 %v183, %v180
    %v229 = vpack.c.b16 %v184, %v181
    %v230 = vpack.c.b16 %v185, %v182
    %v231 = vpack.c.b16 %v189, %v186
    %v232 = vpack.c.b16 %v190, %v187
    %v233 = vpack.c.b16 %v191, %v188
    %v234 = vpack.c.b16 %v195, %v192
    %v235 = vpack.c.b16 %v196, %v193
    %v236 = vpack.c.b16 %v197, %v194
    %v237 = vpack.c.b16 %v201, %v198
    %v238 = vpack.c.b16 %v202, %v199
    %v239 = vpack.c.b16 %v203, %v200
    %v240 = vpack.c.b16 %v207, %v204
    %v241 = vpack.c.b16 %v208, %v205
    %v242 = vpack.c.b16 %v209, %v206
    %v243 = vpack.c.b16 %v213, %v210
    %v244 = vpack.c.b16 %v214, %v211
    %v245 = vpack.c.b16 %v215, %v212
    %v246 = vpack.c.b16 %v219, %v216
    %v247 = vpack.c.b16 %v220, %v217
    %v248 = vpack.c.b16 %v221, %v218
    %v249 = vpack.c.b16 %v225, %v222
    %v250 = vpack.c.b16 %v226, %v223
    %v251 = vpack.c.b16 %v227, %v224
    %276 = vmatprep.subr.bf16.mxu0 %v250
    %277 = vmatpush1.bf16.msra.mxu0 %v249
    %278 = vmatprep.subr.bf16.mxu0 %v247
    %279 = vmatpush1.bf16.msra.mxu0 %v246
    %280 = vmatprep.subr.bf16.mxu0 %v244
    %281 = vmatpush1.bf16.msra.mxu0 %v243
    %282 = vmatprep.subr.bf16.mxu0 %v241
    %283 = vmatpush1.bf16.msra.mxu0 %v240
    %284 = vmatprep.subr.bf16.mxu0 %v238
    %285 = vmatpush1.bf16.msra.mxu0 %v237
    %286 = vmatprep.subr.bf16.mxu0 %v235
    %287 = vmatpush1.bf16.msra.mxu0 %v234
    %288 = vmatprep.subr.bf16.mxu0 %v232
    %289 = vmatpush1.bf16.msra.mxu0 %v231
    %290 = vmatprep.subr.bf16.mxu0 %v229
    %291 = vmatpush1.bf16.msra.mxu0 %v228
    %292 = vmatprep.subr.bf16.mxu0 0
    %293 = vmatpush2.bf16.msra.mxu0 0
    %294 = vmatprep.subr.bf16.mxu0 0
    %295 = vmatpush2.bf16.msra.mxu0 0
    %296 = vmatprep.subr.bf16.mxu0 0
    %297 = vmatpush2.bf16.msra.mxu0 0
    %298 = vmatprep.subr.bf16.mxu0 0
    %299 = vmatpush2.bf16.msra.mxu0 0
    %300 = vmatprep.subr.bf16.mxu0 0
    %301 = vmatpush2.bf16.msra.mxu0 0
    %302 = vmatprep.subr.bf16.mxu0 0
    %303 = vmatpush2.bf16.msra.mxu0 0
    %304 = vmatprep.subr.bf16.mxu0 0
    %305 = vmatpush2.bf16.msra.mxu0 0
    %306 = vmatprep.subr.bf16.mxu0 0
    %307 = vmatpush2.bf16.msra.mxu0 0
    %308 = vmatprep.mubr.bf16.mxu0 0
    %309 = vmatmul.mubr.bf16.gmra.mxu0 %v98
    %v310 = vpop.f32.mrf.mxu0
    %v311 = vadd.f32 %v136, %v310
    %v312 = vpop.f32.mrf.mxu0
    %v313 = vadd.f32 %v140, %v312
    %v314 = vpop.f32.mrf.mxu0
    %v315 = vadd.f32 %v136, %v314
    %v316 = vpop.f32.mrf.mxu0
    %v317 = vadd.f32 %v140, %v316
    %318 = vdwg.mxu0
    %319 = vmatprep.subr.bf16.mxu0 0
    %320 = vmatpush1.bf16.msra.mxu0 %v251
    %321 = vmatprep.subr.bf16.mxu0 0
    %322 = vmatpush1.bf16.msra.mxu0 %v248
    %323 = vmatprep.subr.bf16.mxu0 0
    %324 = vmatpush1.bf16.msra.mxu0 %v245
    %325 = vmatprep.subr.bf16.mxu0 0
    %326 = vmatpush1.bf16.msra.mxu0 %v242
    %327 = vmatprep.subr.bf16.mxu0 0
    %328 = vmatpush1.bf16.msra.mxu0 %v239
    %329 = vmatprep.subr.bf16.mxu0 0
    %330 = vmatpush1.bf16.msra.mxu0 %v236
    %331 = vmatprep.subr.bf16.mxu0 0
    %332 = vmatpush1.bf16.msra.mxu0 %v233
    %333 = vmatprep.subr.bf16.mxu0 0
    %334 = vmatpush1.bf16.msra.mxu0 %v230
    %335 = vmatprep.subr.bf16.mxu0 0
    %336 = vmatpush2.bf16.msra.mxu0 0
    %337 = vmatprep.subr.bf16.mxu0 0
    %338 = vmatpush2.bf16.msra.mxu0 0
    %339 = vmatprep.subr.bf16.mxu0 0
    %340 = vmatpush2.bf16.msra.mxu0 0
    %341 = vmatprep.subr.bf16.mxu0 0
    %342 = vmatpush2.bf16.msra.mxu0 0
    %343 = vmatprep.subr.bf16.mxu0 0
    %344 = vmatpush2.bf16.msra.mxu0 0
    %345 = vmatprep.subr.bf16.mxu0 0
    %346 = vmatpush2.bf16.msra.mxu0 0
    %347 = vmatprep.subr.bf16.mxu0 0
    %348 = vmatpush2.bf16.msra.mxu0 0
    %349 = vmatprep.subr.bf16.mxu0 0
    %350 = vmatpush2.bf16.msra.mxu0 0
    %351 = vmatprep.mubr.bf16.mxu0 0
    %352 = vmatmul.mubr.bf16.gmra.mxu0 %v98
    %v353 = vpop.f32.mrf.mxu0
    %v354 = vadd.f32 %v144, %v353
    %v355 = vpop.f32.mrf.mxu0
    %v356 = vpop.f32.mrf.mxu0
    %v357 = vadd.f32 %v144, %v356
    %v358 = vpop.f32.mrf.mxu0
    %359 = vdwg.mxu0
    %v360 = vpack.c.bf16 %v315, %v311
    %v361 = vpack.c.bf16 %v317, %v313
    %v362 = vpack.c.bf16 %v357, %v354
    %v363 = vld [vmem:[#allocation10] sm:$0xf]
    %v364 = vld [vmem:[#allocation10 + $0x4] sm:$0xf]
    %v365 = vld [vmem:[#allocation10 + $0x8] sm:$0xf]
    %v366 = vld [vmem:[#allocation10 + $0xc] sm:$0xf]
    %v367 = vld [vmem:[#allocation10 + $0x10] sm:$0xf]
    %v368 = vld [vmem:[#allocation10 + $0x14] sm:$0xf]
    %v369 = vld [vmem:[#allocation10 + $0x18] sm:$0xf]
    %v370 = vld [vmem:[#allocation10 + $0x1c] sm:$0xf]
    %v379 = vunpack.c.l.b16 %v363
    %v380 = vunpack.c.l.b16 %v364
    %v381 = vunpack.c.l.b16 %v365
    %v382 = vunpack.c.l.b16 %v366
    %v383 = vunpack.c.l.b16 %v367
    %v384 = vunpack.c.l.b16 %v368
    %v385 = vunpack.c.l.b16 %v369
    %v386 = vunpack.c.l.b16 %v370
    %v387 = vpack.c.b16 %v380, %v379
    %v388 = vpack.c.b16 %v382, %v381
    %v389 = vpack.c.b16 %v384, %v383
    %v390 = vpack.c.b16 %v386, %v385
    %v395 = vmul.bf16 %v361, %v387
    %v396 = vmul.bf16 %v361, %v388
    %v397 = vmul.bf16 %v361, %v389
    %v398 = vmul.bf16 %v361, %v390
    %v399 = vmul.bf16 %v362, %v387
    %v400 = vmul.bf16 %v362, %v388
    %v401 = vmul.bf16 %v362, %v389
    %v402 = vmul.bf16 %v362, %v390
    %v403 = vld [vmem:[#allocation8] sm:$0xff]
    %v404 = vld [vmem:[#allocation8 + $0x8] sm:$0xff]
    %405 = vmatprep.subr.bf16.mxu0 0
    %406 = vmatpush1.bf16.xpose.msra.mxu0 0
    %407 = vmatprep.subr.bf16.mxu0 0
    %408 = vmatpush1.bf16.xpose.msra.mxu0 0
    %409 = vmatprep.subr.bf16.mxu0 0
    %410 = vmatpush1.bf16.xpose.msra.mxu0 0
    %411 = vmatprep.subr.bf16.mxu0 0
    %412 = vmatpush1.bf16.xpose.msra.mxu0 0
    %413 = vmatprep.subr.bf16.mxu0 0
    %414 = vmatpush1.bf16.xpose.msra.mxu0 %v398
    %415 = vmatprep.subr.bf16.mxu0 0
    %416 = vmatpush1.bf16.xpose.msra.mxu0 %v397
    %417 = vmatprep.subr.bf16.mxu0 0
    %418 = vmatpush1.bf16.xpose.msra.mxu0 %v396
    %419 = vmatprep.subr.bf16.mxu0 0
    %420 = vmatpush1.bf16.xpose.msra.mxu0 %v395
    %421 = vmatprep.subr.bf16.mxu0 0
    %422 = vmatpush2.bf16.xpose.msra.mxu0 0
    %423 = vmatprep.subr.bf16.mxu0 0
    %424 = vmatpush2.bf16.xpose.msra.mxu0 0
    %425 = vmatprep.subr.bf16.mxu0 0
    %426 = vmatpush2.bf16.xpose.msra.mxu0 0
    %427 = vmatprep.subr.bf16.mxu0 0
    %428 = vmatpush2.bf16.xpose.msra.mxu0 0
    %429 = vmatprep.subr.bf16.mxu0 0
    %430 = vmatpush2.bf16.xpose.msra.mxu0 0
    %431 = vmatprep.subr.bf16.mxu0 0
    %432 = vmatpush2.bf16.xpose.msra.mxu0 0
    %433 = vmatprep.subr.bf16.mxu0 0
    %434 = vmatpush2.bf16.xpose.msra.mxu0 0
    %435 = vmatprep.subr.bf16.mxu0 0
    %436 = vmatpush2.bf16.xpose.msra.mxu0 0
    %437 = vmatprep.mubr.bf16.mxu0 0
    %438 = vmatmul.mubr.bf16.gmra.mxu0 %v360
    %v439 = vpop.f32.mrf.mxu0
    %v440 = vadd.f32 %v403, %v439
    %v441 = vpop.f32.mrf.mxu0
    %v442 = vpop.f32.mrf.mxu0
    %v443 = vadd.f32 %v404, %v442
    %v444 = vpop.f32.mrf.mxu0
    %445 = vdwg.mxu0
    %vm446 = vcmask 523264
    %v447 = vsel %vm446, %v440, -inf
    %448 = vmax.xlane.f32.xlu0 %v447
    %v449 = vpop.xlane.xlu0 %448
    %v450 = vsel %vm446, %v443, -inf
    %451 = vmax.xlane.f32.xlu0 %v450
    %v452 = vpop.xlane.xlu0 %451
    %v453 = vsub.f32 %v440, %v449
    %v454 = vsub.f32 %v443, %v452
    %v455 = vmul.f32 %v453, 1.442695
    %v456 = vpow.pop %v455
    %v457 = vmul.f32 %v454, 1.442695
    %v458 = vpow.pop %v457
    %v459 = vpack.c.bf16 %v458, %v456
    %v461 = vsel %vm446, %v459, 0
    %463 = vmatprep.subr.bf16.mxu0 0
    %464 = vmatpush1.bf16.msra.mxu0 0
    %465 = vmatprep.subr.bf16.mxu0 0
    %466 = vmatpush1.bf16.msra.mxu0 0
    %467 = vmatprep.subr.bf16.mxu0 0
    %468 = vmatpush1.bf16.msra.mxu0 0
    %469 = vmatprep.subr.bf16.mxu0 0
    %470 = vmatpush1.bf16.msra.mxu0 0
    %471 = vmatprep.subr.bf16.mxu0 %v390
    %472 = vmatpush1.bf16.msra.mxu0 %v402
    %473 = vmatprep.subr.bf16.mxu0 %v389
    %474 = vmatpush1.bf16.msra.mxu0 %v401
    %475 = vmatprep.subr.bf16.mxu0 %v388
    %476 = vmatpush1.bf16.msra.mxu0 %v400
    %477 = vmatprep.subr.bf16.mxu0 %v387
    %478 = vmatpush1.bf16.msra.mxu0 %v399
    %479 = vmatprep.subr.bf16.mxu0 0
    %480 = vmatpush2.bf16.msra.mxu0 0
    %481 = vmatprep.subr.bf16.mxu0 0
    %482 = vmatpush2.bf16.msra.mxu0 0
    %483 = vmatprep.subr.bf16.mxu0 0
    %484 = vmatpush2.bf16.msra.mxu0 0
    %485 = vmatprep.subr.bf16.mxu0 0
    %486 = vmatpush2.bf16.msra.mxu0 0
    %487 = vmatprep.subr.bf16.mxu0 0
    %488 = vmatpush2.bf16.msra.mxu0 0
    %489 = vmatprep.subr.bf16.mxu0 0
    %490 = vmatpush2.bf16.msra.mxu0 0
    %491 = vmatprep.subr.bf16.mxu0 0
    %492 = vmatpush2.bf16.msra.mxu0 0
    %493 = vmatprep.subr.bf16.mxu0 0
    %494 = vmatpush2.bf16.msra.mxu0 0
    %495 = vmatprep.mubr.bf16.mxu0 0
    %496 = vmatmul.mubr.bf16.gmra.mxu0 %v461
    %v497 = vpop.f32.mrf.mxu0
    %v498 = vadd.f32 0.0, %v497
    %v499 = vpop.f32.mrf.mxu0
    %v500 = vadd.f32 0.0, %v499
    %v501 = vpop.f32.mrf.mxu0
    %v502 = vadd.f32 0.0, %v501
    %v503 = vpop.f32.mrf.mxu0
    %v504 = vadd.f32 0.0, %v503
    %505 = vdwg.mxu0
    %v506 = vrcp.pop %v500
    %v507 = vrcp.pop %v504
    %v508 = vmul.f32 %v498, %v506
    %v509 = vmul.f32 %v502, %v507
    %v510 = vpack.c.bf16 %v509, %v508
    %v511 = vld [vmem:[#allocation7] sm:$0xf]
    %v512 = vld [vmem:[#allocation7 + $0x4] sm:$0xf]
    %v513 = vld [vmem:[#allocation7 + $0x8] sm:$0xf]
    %v514 = vld [vmem:[#allocation7 + $0xc] sm:$0xf]
    %v515 = vld [vmem:[#allocation7 + $0x10] sm:$0xf]
    %v516 = vld [vmem:[#allocation7 + $0x14] sm:$0xf]
    %v517 = vld [vmem:[#allocation7 + $0x18] sm:$0xf]
    %v518 = vld [vmem:[#allocation7 + $0x1c] sm:$0xf]
    %v519 = vld [vmem:[#allocation7 + $0x20] sm:$0xf]
    %v520 = vld [vmem:[#allocation7 + $0x24] sm:$0xf]
    %v521 = vld [vmem:[#allocation7 + $0x28] sm:$0xf]
    %v522 = vld [vmem:[#allocation7 + $0x2c] sm:$0xf]
    %v523 = vld [vmem:[#allocation7 + $0x30] sm:$0xf]
    %v524 = vld [vmem:[#allocation7 + $0x34] sm:$0xf]
    %v525 = vld [vmem:[#allocation7 + $0x38] sm:$0xf]
    %v526 = vld [vmem:[#allocation7 + $0x3c] sm:$0xf]
    %v527 = vld [vmem:[%s4] sm:$0x1]
    %v529 = vlaneseq
    %v530 = vshrl.u32 %v529, 7
    %v531 = vsub.s32 0, %v530
    %v532 = vrot.slane %v527, %v531
    %v550 = vunpack.c.l.b16 %v511
    %v551 = vunpack.c.l.b16 %v512
    %v552 = vunpack.c.l.b16 %v513
    %v553 = vunpack.c.l.b16 %v514
    %v554 = vunpack.c.l.b16 %v515
    %v555 = vunpack.c.l.b16 %v516
    %v556 = vunpack.c.l.b16 %v517
    %v557 = vunpack.c.l.b16 %v518
    %v558 = vunpack.c.l.b16 %v519
    %v559 = vunpack.c.l.b16 %v520
    %v560 = vunpack.c.l.b16 %v521
    %v561 = vunpack.c.l.b16 %v522
    %v562 = vunpack.c.l.b16 %v523
    %v563 = vunpack.c.l.b16 %v524
    %v564 = vunpack.c.l.b16 %v525
    %v565 = vunpack.c.l.b16 %v526
    %v566 = vpack.c.b16 %v551, %v550
    %v567 = vpack.c.b16 %v553, %v552
    %v568 = vpack.c.b16 %v555, %v554
    %v569 = vpack.c.b16 %v557, %v556
    %v570 = vpack.c.b16 %v559, %v558
    %v571 = vpack.c.b16 %v561, %v560
    %v572 = vpack.c.b16 %v563, %v562
    %v573 = vpack.c.b16 %v565, %v564
    %582 = vmatprep.subr.bf16.mxu0 0
    %583 = vmatpush1.bf16.msra.mxu0 %v573
    %584 = vmatprep.subr.bf16.mxu0 0
    %585 = vmatpush1.bf16.msra.mxu0 %v572
    %586 = vmatprep.subr.bf16.mxu0 0
    %587 = vmatpush1.bf16.msra.mxu0 %v571
    %588 = vmatprep.subr.bf16.mxu0 0
    %589 = vmatpush1.bf16.msra.mxu0 %v570
    %590 = vmatprep.subr.bf16.mxu0 0
    %591 = vmatpush1.bf16.msra.mxu0 %v569
    %592 = vmatprep.subr.bf16.mxu0 0
    %593 = vmatpush1.bf16.msra.mxu0 %v568
    %594 = vmatprep.subr.bf16.mxu0 0
    %595 = vmatpush1.bf16.msra.mxu0 %v567
    %596 = vmatprep.subr.bf16.mxu0 0
    %597 = vmatpush1.bf16.msra.mxu0 %v566
    %598 = vmatprep.subr.bf16.mxu0 0
    %599 = vmatpush2.bf16.msra.mxu0 0
    %600 = vmatprep.subr.bf16.mxu0 0
    %601 = vmatpush2.bf16.msra.mxu0 0
    %602 = vmatprep.subr.bf16.mxu0 0
    %603 = vmatpush2.bf16.msra.mxu0 0
    %604 = vmatprep.subr.bf16.mxu0 0
    %605 = vmatpush2.bf16.msra.mxu0 0
    %606 = vmatprep.subr.bf16.mxu0 0
    %607 = vmatpush2.bf16.msra.mxu0 0
    %608 = vmatprep.subr.bf16.mxu0 0
    %609 = vmatpush2.bf16.msra.mxu0 0
    %610 = vmatprep.subr.bf16.mxu0 0
    %611 = vmatpush2.bf16.msra.mxu0 0
    %612 = vmatprep.subr.bf16.mxu0 0
    %613 = vmatpush2.bf16.msra.mxu0 0
    %614 = vmatprep.mubr.bf16.mxu0 0
    %615 = vmatmul.mubr.bf16.gmra.mxu0 %v510
    %v616 = vpop.f32.mrf.mxu0
    %v617 = vadd.f32 %v532, %v616
    %v618 = vpop.f32.mrf.mxu0
    %v619 = vpop.f32.mrf.mxu0
    %v620 = vadd.f32 %v532, %v619
    %v621 = vpop.f32.mrf.mxu0
    %622 = vdwg.mxu0
    %623 = vst [vmem:[#allocation11] sm:$0xff] %v617
    %624 = vst [vmem:[#allocation11 + $0x8] sm:$0xff] %v620
    // Predicated region
    $region50: #{tpu_custom_call.1} parent=1 // pred_check
      _
    $region51: #{tpu_custom_call.1} parent=1 // pred_check_branch
      %626 = sbr.rel (0) target = $region53
    $region52: #{tpu_custom_call.1} parent=1 // pred_region
      %s628 = ssub.s32 256, 256
      %629 = vsyncadd [#allocation4], %s628
      %s630 = sshll.u32 [#allocation11], 4
      %s631 = int_to_ptr.vmem [resolvable:$true] %s630
      %636 = dma.vmem_to_hbm [thread:$0]  %s631, 256, %s7, [#allocation4], 128, 128, 8
    $region53: #{tpu_custom_call.1} parent=1 // pred_fallthru
      _
    // Predicated region
    $region54: #{tpu_custom_call.1} parent=1 // pred_check
      _
    $region55: #{tpu_custom_call.1} parent=1 // pred_check_branch
      %638 = sbr.rel (0) target = $region57
    $region56: #{tpu_custom_call.1} parent=1 // pred_region
      %639 = dma.done [#allocation4], 256
    $region57: #{tpu_custom_call.1} parent=1 // pred_fallthru
      _
    %640 = vsyncpa [#allocation3], 1
    %641 = vsyncpa [#allocation6], 1
    %642 = vsyncpa [#allocation9], 1
    %643 = vsyncpa [#allocation4], 1

</llo_original>
